<compile_context>
chip_gen: v5e
topology: v5e:2x2
jax: 0.10.0
libtpu: 0.0.40
codegen_flags: <defaults>
</compile_context>

<pallas_src>
import functools

import jax
import jax.numpy as jnp
from jax import lax
from jax.experimental import pallas as pl
from jax.experimental.pallas import tpu as pltpu


def _round_up(a, m):
    return -(-a // m) * m


@functools.lru_cache(maxsize=None)
def _vmem_budget():
    """(vmem_limit_bytes, I/O block budget), generation aware."""
    try:
        cap = int(pltpu.get_tpu_info().vmem_capacity_bytes)
    except Exception:
        cap = 64 << 20                      # conservative default (v7x per-TC)
    limit = min((cap * 3) // 4, 96 << 20)   # leave compiler scratch headroom
    return limit, limit // 2                # half the limit for I/O blocks


def _pick_batch_tile(B, S, D, itemsize, io_budget_bytes, *, flat):
    """Largest batch tile that divides B, fits the double-buffered working set
    (lane-padding aware), satisfies the (8, 128) block constraint, and when
    possible leaves an even number >= 2 of grid steps (megacore / overlap)."""
    if flat:
        io_row = _round_up(S * D, 128) * itemsize            # lane-dense rows
        f32_row = _round_up(S * D, 128) * 4
    else:
        io_row = _round_up(S, 8) * _round_up(D, 128) * itemsize  # lane-padded
        f32_row = _round_up(S, 8) * _round_up(D, 128) * 4
    # Per batch element: 2 (double buffer) * 3 I/O arrays + ~5 f32 temporaries.
    per_b = 2 * 3 * io_row + 5 * f32_row
    max_bt = max(1, io_budget_bytes // per_b)

    def valid(bt):
        if B % bt:
            return False
        if flat:
            # bt is the second-minor dim of a 2-D block: multiple of 8 or full.
            return bt % 8 == 0 or bt == B
        return True

    cands = [bt for bt in range(1, B + 1) if valid(bt) and bt <= max_bt]
    if not cands:
        return B                                   # single full block fallback
    multi = [bt for bt in cands if B // bt >= 2]
    even = [bt for bt in multi if (B // bt) % 2 == 0]
    pool = even or multi or cands
    return max(pool)


# ---------------------------------------------------------------------------
# Lane-dense flat path (D not a multiple of 128, S*D small)
# ---------------------------------------------------------------------------
def _flat_kernel(x_ref, wbd_ref, b_ref, ssum_ref, mid_ref, out_ref):
    # x_ref / mid_ref / out_ref: (Bt, S*D)  lane-dense VMEM blocks
    # wbd_ref:  (S*D, S*D) = kron(I_S, W^T)       (resident)
    # b_ref:    (1, S*D)   = bias tiled S times   (resident)
    # ssum_ref: (S*D, S*D) = kron(1_{SxS}, I_D)   (resident)
    energy = jnp.dot(x_ref[...], wbd_ref[...],
                     preferred_element_type=jnp.float32)      # (Bt, S*D)
    energy = jnp.tanh(energy + b_ref[...])                    # in [-1, 1]
    # Softmax over the sequence axis; tanh bounds the logits so no max-shift.
    p = jnp.exp(energy)
    # Per-feature sum over S, broadcast back across S -- done on the MXU so the
    # whole kernel stays in the lane-dense (Bt, S*D) layout (no relayouts).
    denom = jnp.dot(p, ssum_ref[...], preferred_element_type=jnp.float32)
    weights = p / denom                                       # exact divide
    out_ref[...] = (mid_ref[...] * weights.astype(mid_ref.dtype)
                    ).astype(out_ref.dtype)


def _flat_call(x, mid, weight, bias):
    B, S, D = x.shape
    SD = S * D
    itemsize = jnp.dtype(x.dtype).itemsize
    vmem_limit, io_budget = _vmem_budget()
    bt = _pick_batch_tile(B, S, D, itemsize, io_budget, flat=True)
    grid = (B // bt,)

    x_flat = x.reshape(B, SD)                   # free: contiguous in HBM
    mid_flat = mid.reshape(B, SD)
    # Block-diagonal projection (only a D x D transpose feeds the kron; no
    # full-size transposed weight operand is materialized).
    w_bd = jnp.kron(jnp.eye(S, dtype=weight.dtype), weight.T)        # (SD, SD)
    b_flat = jnp.tile(bias, S).reshape(1, SD)
    ssum = jnp.kron(jnp.ones((S, S), jnp.float32),
                    jnp.eye(D, dtype=jnp.float32))                   # (SD, SD)

    cost = pl.CostEstimate(
        flops=4 * B * SD * SD,                  # two (Bt,SD) x (SD,SD) matmuls
        transcendentals=2 * B * SD,             # tanh + exp
        bytes_accessed=(3 * B * SD + 2 * SD * SD + SD) * itemsize,
    )
    out_flat = pl.pallas_call(
        _flat_kernel,
        out_shape=jax.ShapeDtypeStruct((B, SD), mid.dtype),
        grid=grid,
        in_specs=[
            pl.BlockSpec((bt, SD), lambda i: (i, 0)),     # x (lane-dense)
            pl.BlockSpec((SD, SD), lambda i: (0, 0)),     # kron(I_S, W^T)
            pl.BlockSpec((1, SD), lambda i: (0, 0)),      # tiled bias
            pl.BlockSpec((SD, SD), lambda i: (0, 0)),     # seq-sum matrix
            pl.BlockSpec((bt, SD), lambda i: (i, 0)),     # middle_outputs
        ],
        out_specs=pl.BlockSpec((bt, SD), lambda i: (i, 0)),
        compiler_params=pltpu.CompilerParams(
            dimension_semantics=("parallel",),            # megacore on v7x
            vmem_limit_bytes=vmem_limit,
        ),
        cost_estimate=cost,
    )(x_flat, w_bd, b_flat, ssum, mid_flat)
    return out_flat.reshape(B, S, D)


# ---------------------------------------------------------------------------
# 3-D fallback path (D already lane-dense, or S*D too large for the flat trick)
# ---------------------------------------------------------------------------
def _tiled_kernel(x_ref, w_ref, b_ref, mid_ref, out_ref):
    # x_ref / mid_ref / out_ref: (Bt, S, D); w_ref: (D, D) (out, in); b_ref: (1, D)
    Bt, S, D = x_ref.shape
    if S % 8 == 0:
        # Collapse (Bt, S) (sublane-trivial merge) into one M dim so a single
        # (Bt*S, D) @ W^T matmul keeps the MXU full.
        x2 = x_ref[...].reshape(Bt * S, D)
        energy = lax.dot_general(
            x2, w_ref[...],
            dimension_numbers=(((1,), (1,)), ((), ())),   # contract W's "in" dim
            preferred_element_type=jnp.float32)
        energy = (energy + b_ref[...]).reshape(Bt, S, D)
    else:
        energy = jnp.einsum("bsd,ed->bse", x_ref[...], w_ref[...],
                            preferred_element_type=jnp.float32) + b_ref[...]
    energy = jnp.tanh(energy)                             # bounded to [-1, 1]
    # TODO(synk): for very long S add an extra "arbitrary" grid axis over the
    # sequence with a two-pass (running-denominator) softmax so the whole S
    # axis need not fit in one block on 64 MiB (v7x) VMEM.
    p = jnp.exp(energy)                                   # no max-shift needed
    denom = jnp.sum(p, axis=1, keepdims=True)
    weights = p / denom                                   # exact divide
    out_ref[...] = (mid_ref[...] * weights.astype(mid_ref.dtype)
                    ).astype(out_ref.dtype)


def _tiled_call(x, mid, weight, bias):
    B, S, D = x.shape
    itemsize = jnp.dtype(x.dtype).itemsize
    vmem_limit, io_budget = _vmem_budget()
    bt = _pick_batch_tile(B, S, D, itemsize, io_budget, flat=False)
    grid = (B // bt,)
    b2 = bias.reshape(1, D)
    cost = pl.CostEstimate(
        flops=2 * B * S * D * D,
        transcendentals=2 * B * S * D,
        bytes_accessed=(3 * B * S * D + D * D + D) * itemsize,
    )
    return pl.pallas_call(
        _tiled_kernel,
        out_shape=jax.ShapeDtypeStruct((B, S, D), mid.dtype),
        grid=grid,
        in_specs=[
            pl.BlockSpec((bt, S, D), lambda i: (i, 0, 0)),   # x tile
            pl.BlockSpec((D, D), lambda i: (0, 0)),          # W (resident)
            pl.BlockSpec((1, D), lambda i: (0, 0)),          # bias (resident)
            pl.BlockSpec((bt, S, D), lambda i: (i, 0, 0)),   # middle_outputs
        ],
        out_specs=pl.BlockSpec((bt, S, D), lambda i: (i, 0, 0)),
        compiler_params=pltpu.CompilerParams(
            dimension_semantics=("parallel",),
            vmem_limit_bytes=vmem_limit,
        ),
        cost_estimate=cost,
    )(x, weight, b2, mid)


@jax.jit
def self_attention(x, middle_outputs, weight, bias):
    """x, middle_outputs: (B, S, D); weight: PyTorch Linear (out, in) = (D, D);
    bias: (D,)."""
    B, S, D = x.shape
    # Lane-dense flat path whenever D under-fills the 128-lane vreg and the
    # (S*D, S*D) relayout-as-matmul operands stay tiny and VMEM-resident.
    if D % 128 != 0 and S * D <= 512:
        return _flat_call(x, middle_outputs, weight, bias)
    return _tiled_call(x, middle_outputs, weight, bias)


def _reference(x, middle_outputs, weight, bias):
    energy = jnp.tanh(
        jnp.einsum("bsd,od->bso", x, weight,
                   precision=jax.lax.Precision.HIGHEST) + bias)
    # squeeze(-1) in the PyTorch module is a no-op for D > 1
    weights = jax.nn.softmax(energy, axis=1)
    return middle_outputs * weights


if __name__ == "__main__":
    B, S, D = 2, 8, 32  # batch, seq, input_size
    key = jax.random.PRNGKey(0)
    kx, km, kw, kb = jax.random.split(key, 4)

    x = jax.random.normal(kx, (B, S, D), dtype=jnp.float32)
    middle_outputs = jax.random.normal(km, (B, S, D), dtype=jnp.float32)

    # Deterministic parameter init (PyTorch Linear: weight (out, in), bias (out,)).
    bound = 1.0 / (D ** 0.5)
    weight = jax.random.uniform(kw, (D, D), minval=-bound, maxval=bound,
                                dtype=jnp.float32)
    bias = jax.random.uniform(kb, (D,), minval=-bound, maxval=bound,
                              dtype=jnp.float32)

    out = jax.block_until_ready(self_attention(x, middle_outputs, weight, bias))
    ref = _reference(x, middle_outputs, weight, bias)

    assert out.shape == (B, S, D)
    max_err = float(jnp.max(jnp.abs(out - ref)))
    # Exact softmax division now -> tighter tolerance than the previous version.
    assert jnp.allclose(out, ref, atol=1e-3, rtol=1e-3), max_err

    print("KERNEL_OK")
</pallas_src>

<mosaic_0001>
module attributes {stable_mosaic.version = 11 : i64} {
  func.func @_flat_kernel(%arg0: i32, %arg1: memref<2x256xf32, #tpu.memory_space<vmem>>, %arg2: memref<256x256xf32, #tpu.memory_space<vmem>>, %arg3: memref<1x256xf32, #tpu.memory_space<vmem>>, %arg4: memref<256x256xf32, #tpu.memory_space<vmem>>, %arg5: memref<2x256xf32, #tpu.memory_space<vmem>>, %arg6: memref<2x256xf32, #tpu.memory_space<vmem>>) attributes {dimension_semantics = [#tpu.dimension_semantics<parallel>], iteration_bounds = array<i64: 1>, scalar_prefetch = 0 : i64, scratch_operands = 0 : i64, tpu.core_type = #tpu.core_type<tc>, window_params = [{transform_indices = @transform_0, window_bounds = array<i64: 2, 256>}, {pipeline_mode = #tpu.pipeline_mode<synchronous>, transform_indices = @transform_1, window_bounds = array<i64: 256, 256>}, {pipeline_mode = #tpu.pipeline_mode<synchronous>, transform_indices = @transform_2, window_bounds = array<i64: 1, 256>}, {pipeline_mode = #tpu.pipeline_mode<synchronous>, transform_indices = @transform_3, window_bounds = array<i64: 256, 256>}, {transform_indices = @transform_4, window_bounds = array<i64: 2, 256>}, {transform_indices = @transform_5, window_bounds = array<i64: 2, 256>}]} {
    %c0 = arith.constant 0 : index
    %c0_0 = arith.constant 0 : index
    %0 = vector.load %arg1[%c0, %c0_0] : memref<2x256xf32, #tpu.memory_space<vmem>>, vector<2x256xf32>
    %c0_1 = arith.constant 0 : index
    %c0_2 = arith.constant 0 : index
    %1 = vector.load %arg2[%c0_1, %c0_2] : memref<256x256xf32, #tpu.memory_space<vmem>>, vector<256x256xf32>
    %cst = arith.constant dense<0.000000e+00> : vector<2x256xf32>
    %2 = tpu.matmul %0, %1, %cst {dimension_numbers = #tpu.dot_dimension_numbers<[1], [0], [0], [1], [0, 0, 1, 1], [], []>} : vector<2x256xf32>, vector<256x256xf32>, vector<2x256xf32> -> vector<2x256xf32>
    %c0_3 = arith.constant 0 : index
    %c0_4 = arith.constant 0 : index
    %3 = vector.load %arg3[%c0_3, %c0_4] : memref<1x256xf32, #tpu.memory_space<vmem>>, vector<1x256xf32>
    %4 = vector.broadcast %3 : vector<1x256xf32> to vector<2x256xf32>
    %5 = arith.addf %2, %4 : vector<2x256xf32>
    %6 = math.tanh %5 : vector<2x256xf32>
    %7 = math.exp %6 : vector<2x256xf32>
    %c0_5 = arith.constant 0 : index
    %c0_6 = arith.constant 0 : index
    %8 = vector.load %arg4[%c0_5, %c0_6] : memref<256x256xf32, #tpu.memory_space<vmem>>, vector<256x256xf32>
    %cst_7 = arith.constant dense<0.000000e+00> : vector<2x256xf32>
    %9 = tpu.matmul %7, %8, %cst_7 {dimension_numbers = #tpu.dot_dimension_numbers<[1], [0], [0], [1], [0, 0, 1, 1], [], []>} : vector<2x256xf32>, vector<256x256xf32>, vector<2x256xf32> -> vector<2x256xf32>
    %10 = arith.divf %7, %9 : vector<2x256xf32>
    %c0_8 = arith.constant 0 : index
    %c0_9 = arith.constant 0 : index
    %11 = vector.load %arg5[%c0_8, %c0_9] : memref<2x256xf32, #tpu.memory_space<vmem>>, vector<2x256xf32>
    %12 = arith.mulf %11, %10 : vector<2x256xf32>
    %c0_10 = arith.constant 0 : index
    %c0_11 = arith.constant 0 : index
    %13 = vector.load %arg6[%c0_10, %c0_11] : memref<2x256xf32, #tpu.memory_space<vmem>>, vector<2x256xf32>
    tpu.vector_store %arg6[%c0_10, %c0_11], %12 {strides = array<i32>} : memref<2x256xf32, #tpu.memory_space<vmem>>, vector<2x256xf32>,
    return
  }
  func.func @transform_0(%arg0: i32) -> (i32, i32) {
    %c0_i32 = arith.constant 0 : i32
    %c0_i32_0 = arith.constant 0 : i32
    return %arg0, %c0_i32 : i32, i32
  }
  func.func @transform_1(%arg0: i32) -> (i32, i32) {
    %c0_i32 = arith.constant 0 : i32
    %c0_i32_0 = arith.constant 0 : i32
    %c0_i32_1 = arith.constant 0 : i32
    return %c0_i32, %c0_i32_0 : i32, i32
  }
  func.func @transform_2(%arg0: i32) -> (i32, i32) {
    %c0_i32 = arith.constant 0 : i32
    %c0_i32_0 = arith.constant 0 : i32
    %c0_i32_1 = arith.constant 0 : i32
    return %c0_i32, %c0_i32_0 : i32, i32
  }
  func.func @transform_3(%arg0: i32) -> (i32, i32) {
    %c0_i32 = arith.constant 0 : i32
    %c0_i32_0 = arith.constant 0 : i32
    %c0_i32_1 = arith.constant 0 : i32
    return %c0_i32, %c0_i32_0 : i32, i32
  }
  func.func @transform_4(%arg0: i32) -> (i32, i32) {
    %c0_i32 = arith.constant 0 : i32
    %c0_i32_0 = arith.constant 0 : i32
    return %arg0, %c0_i32 : i32, i32
  }
  func.func @transform_5(%arg0: i32) -> (i32, i32) {
    %c0_i32 = arith.constant 0 : i32
    %c0_i32_0 = arith.constant 0 : i32
    return %arg0, %c0_i32 : i32, i32
  }
}

</mosaic_0001>

<llo_original>
// kernel: tile.8
$region0: #{tile.8}
  #allocation0 [shape = 's32[1]{0}', space=sflag, size = 0x4, scoped, tag = 'scoped memory for tile.8']
  %s0 = inlined_call_operand.vmem [shape: f32[32], index: 0, kind: input, shape index: {}]
  %s1 = inlined_call_operand.vmem [shape: f32[8,32], index: 1, kind: output, shape index: {}]
  // Predicated region
  $region2: #{tile.8} parent=0 // pred_check
    _
  $region3: #{tile.8} parent=0 // pred_check_branch
    %3 = sbr.rel (0) target = $region5
  $region4: #{tile.8} parent=0 // pred_region
    _
  $region5: #{tile.8} parent=0 // pred_fallthru
    _
  %v4 = vld [vmem:[%s0] ss:$0 sm:$0xff]
  %5 = vst [vmem:[%s1] sm:$0xff] %v4

// kernel: tile.9
$region0: #{tile.9}
  %s0 = inlined_call_operand.vmem [shape: f32[8,32], index: 0, kind: input, shape index: {}]
  %s1 = inlined_call_operand.vmem [shape: f32[1,256], index: 1, kind: output, shape index: {}]
  $region1: #{tile.9} parent=0
    #allocation0 [shape = 'u8[8192]{0}', space=vmem, size = 0x2000, scoped, tag = 'scoped mem for output reshape']
    %s2 = smov 3
    %v3 = vld [vmem:[%s0] ss:$4 sm:%s2]
    %vm4 = vcmask 261120
    %5 = vst.msk [vmem:[#allocation0] ss:$8 sm:$0x3] %vm4, %v3
    %s6 = scalar_lea.vmem %s0, 3
    %s7 = smov 3
    %v8 = vld [vmem:[%s6] ss:$4 sm:%s7]
    %9 = vrot.lane.b32.xlu0 %v8, 96
    %v10 = vpop.permute.xlu0 %9
    %vm11 = vcmask 1048320
    %12 = vst.msk [vmem:[#allocation0] ss:$8 sm:$0x3] %vm11, %v10
    %s13 = scalar_lea.vmem %s0, 2
    %s14 = smov 3
    %v15 = vld [vmem:[%s13] ss:$4 sm:%s14]
    %16 = vrot.lane.b32.xlu0 %v15, 64
    %v17 = vpop.permute.xlu0 %16
    %vm18 = vcmask 785920
    %19 = vst.msk [vmem:[#allocation0] ss:$8 sm:$0x3] %vm18, %v17
    %s20 = scalar_lea.vmem %s0, 1
    %s21 = smov 3
    %v22 = vld [vmem:[%s20] ss:$4 sm:%s21]
    %23 = vrot.lane.b32.xlu0 %v22, 32
    %v24 = vpop.permute.xlu0 %23
    %vm25 = vcmask 523520
    %26 = vst.msk [vmem:[#allocation0] ss:$8 sm:$0x3] %vm25, %v24
    %s28 = ssub.s32 2, 1
    %v29 = vld [vmem:[#allocation0] sm:%s28]
    %s31 = ssub.s32 2, 1
    %32 = vst [vmem:[%s1] sm:%s31] %v29
    %s33 = scalar_lea.vmem [#allocation0], 8
    %v34 = vld [vmem:[%s33] sm:%s28]
    %s36 = ssub.s32 2, 1
    %s37 = scalar_lea.vmem %s1, 1
    %38 = vst [vmem:[%s37] sm:%s36] %v34

// kernel: self_attention.1
$region0: #{self_attention.1}
  #allocation0 [shape = 'u32[]', space=smem, size = 0x4, offset = 0x4, fixed_abs, tag = 'smem constant byte address 0x4 - core index']
  #allocation1 [shape = 'u32[72,128]{1,0:T(1,128)}', space=vmem, size = 0x9000, scoped, tag = 'internal scratch']
  %s0 = inlined_call_operand.vmem [shape: f32[2,256], index: 0, kind: input, shape index: {}]
  %s1 = inlined_call_operand.vmem [shape: f32[256,256], index: 1, kind: input, shape index: {}]
  %s2 = inlined_call_operand.vmem [shape: f32[1,256], index: 2, kind: input, shape index: {}]
  %s3 = inlined_call_operand.vmem [shape: f32[256,256], index: 3, kind: input, shape index: {}]
  %s4 = inlined_call_operand.vmem [shape: f32[2,256], index: 4, kind: input, shape index: {}]
  %s5 = inlined_call_operand.vmem [shape: f32[2,256], index: 5, kind: output, shape index: {}]
  %s6 = sld [smem:[#allocation0]]
  $region30: #{self_attention.1} parent=0
    _
  %s8 = ssub.s32 1, %s6
  %s9 = scalar_select 0, %s8, %s6
  // Predicated region
  $region2: #{self_attention.1} parent=0 // pred_check
    _
  $region3: #{self_attention.1} parent=0 // pred_check_branch
    %11 = sbr.rel (0) target = $region5
  $region4: #{self_attention.1} parent=0 // pred_region
    _
  $region5: #{self_attention.1} parent=0 // pred_fallthru
    _
  // Predicated region
  $region6: #{self_attention.1} parent=0 // pred_check
    _
  $region7: #{self_attention.1} parent=0 // pred_check_branch
    %13 = sbr.rel (0) target = $region9
  $region8: #{self_attention.1} parent=0 // pred_region
    _
  $region9: #{self_attention.1} parent=0 // pred_fallthru
    _
  // Predicated region
  $region10: #{self_attention.1} parent=0 // pred_check
    _
  $region11: #{self_attention.1} parent=0 // pred_check_branch
    %15 = sbr.rel (0) target = $region13
  $region12: #{self_attention.1} parent=0 // pred_region
    _
  $region13: #{self_attention.1} parent=0 // pred_fallthru
    _
  // Predicated region
  $region14: #{self_attention.1} parent=0 // pred_check
    _
  $region15: #{self_attention.1} parent=0 // pred_check_branch
    %17 = sbr.rel (0) target = $region17
  $region16: #{self_attention.1} parent=0 // pred_region
    _
  $region17: #{self_attention.1} parent=0 // pred_fallthru
    _
  // Predicated region
  $region18: #{self_attention.1} parent=0 // pred_check
    _
  $region19: #{self_attention.1} parent=0 // pred_check_branch
    %19 = sbr.rel (0) target = $region21
  $region20: #{self_attention.1} parent=0 // pred_region
    _
  $region21: #{self_attention.1} parent=0 // pred_fallthru
    _
  %v20 = vld [vmem:[%s0] sm:$0xf]
  %v21 = vld [vmem:[%s1] sm:$0xff]
  %v22 = vld [vmem:[%s1 + $0x8] sm:$0xff]
  %v23 = vld [vmem:[%s1 + $0x10] sm:$0xff]
  %v24 = vld [vmem:[%s1 + $0x18] sm:$0xff]
  %v25 = vld [vmem:[%s1 + $0x20] sm:$0xff]
  %v26 = vld [vmem:[%s1 + $0x28] sm:$0xff]
  %v27 = vld [vmem:[%s1 + $0x30] sm:$0xff]
  %v28 = vld [vmem:[%s1 + $0x38] sm:$0xff]
  %v29 = vld [vmem:[%s1 + $0x40] sm:$0xff]
  %v30 = vld [vmem:[%s1 + $0x48] sm:$0xff]
  %v31 = vld [vmem:[%s1 + $0x50] sm:$0xff]
  %v32 = vld [vmem:[%s1 + $0x58] sm:$0xff]
  %v33 = vld [vmem:[%s1 + $0x60] sm:$0xff]
  %v34 = vld [vmem:[%s1 + $0x68] sm:$0xff]
  %v35 = vld [vmem:[%s1 + $0x70] sm:$0xff]
  %v36 = vld [vmem:[%s1 + $0x78] sm:$0xff]
  %v37 = vld [vmem:[%s1 + $0x80] sm:$0xff]
  %v38 = vld [vmem:[%s1 + $0x88] sm:$0xff]
  %v39 = vld [vmem:[%s1 + $0x90] sm:$0xff]
  %v40 = vld [vmem:[%s1 + $0x98] sm:$0xff]
  %v41 = vld [vmem:[%s1 + $0xa0] sm:$0xff]
  %v42 = vld [vmem:[%s1 + $0xa8] sm:$0xff]
  %v43 = vld [vmem:[%s1 + $0xb0] sm:$0xff]
  %v44 = vld [vmem:[%s1 + $0xb8] sm:$0xff]
  %v45 = vld [vmem:[%s1 + $0xc0] sm:$0xff]
  %v46 = vld [vmem:[%s1 + $0xc8] sm:$0xff]
  %v47 = vld [vmem:[%s1 + $0xd0] sm:$0xff]
  %v48 = vld [vmem:[%s1 + $0xd8] sm:$0xff]
  %v49 = vld [vmem:[%s1 + $0xe0] sm:$0xff]
  %v50 = vld [vmem:[%s1 + $0xe8] sm:$0xff]
  %v51 = vld [vmem:[%s1 + $0xf0] sm:$0xff]
  %v52 = vld [vmem:[%s1 + $0xf8] sm:$0xff]
  %v53 = vld [vmem:[%s1 + $0x100] sm:$0xff]
  %v54 = vld [vmem:[%s1 + $0x108] sm:$0xff]
  %v55 = vld [vmem:[%s1 + $0x110] sm:$0xff]
  %v56 = vld [vmem:[%s1 + $0x118] sm:$0xff]
  %v57 = vld [vmem:[%s1 + $0x120] sm:$0xff]
  %v58 = vld [vmem:[%s1 + $0x128] sm:$0xff]
  %v59 = vld [vmem:[%s1 + $0x130] sm:$0xff]
  %v60 = vld [vmem:[%s1 + $0x138] sm:$0xff]
  %v61 = vld [vmem:[%s1 + $0x140] sm:$0xff]
  %v62 = vld [vmem:[%s1 + $0x148] sm:$0xff]
  %v63 = vld [vmem:[%s1 + $0x150] sm:$0xff]
  %v64 = vld [vmem:[%s1 + $0x158] sm:$0xff]
  %v65 = vld [vmem:[%s1 + $0x160] sm:$0xff]
  %v66 = vld [vmem:[%s1 + $0x168] sm:$0xff]
  %v67 = vld [vmem:[%s1 + $0x170] sm:$0xff]
  %v68 = vld [vmem:[%s1 + $0x178] sm:$0xff]
  %v69 = vld [vmem:[%s1 + $0x180] sm:$0xff]
  %v70 = vld [vmem:[%s1 + $0x188] sm:$0xff]
  %v71 = vld [vmem:[%s1 + $0x190] sm:$0xff]
  %v72 = vld [vmem:[%s1 + $0x198] sm:$0xff]
  %v73 = vld [vmem:[%s1 + $0x1a0] sm:$0xff]
  %v74 = vld [vmem:[%s1 + $0x1a8] sm:$0xff]
  %v75 = vld [vmem:[%s1 + $0x1b0] sm:$0xff]
  %v76 = vld [vmem:[%s1 + $0x1b8] sm:$0xff]
  %v77 = vld [vmem:[%s1 + $0x1c0] sm:$0xff]
  %v78 = vld [vmem:[%s1 + $0x1c8] sm:$0xff]
  %v79 = vld [vmem:[%s1 + $0x1d0] sm:$0xff]
  %v80 = vld [vmem:[%s1 + $0x1d8] sm:$0xff]
  %v81 = vld [vmem:[%s1 + $0x1e0] sm:$0xff]
  %v82 = vld [vmem:[%s1 + $0x1e8] sm:$0xff]
  %v83 = vld [vmem:[%s1 + $0x1f0] sm:$0xff]
  %v84 = vld [vmem:[%s1 + $0x1f8] sm:$0xff]
  %v85 = vld [vmem:[%s2] sm:$0x3]
  %v87 = vperm.slane %v85, 0
  %v88 = vperm.slane %v85, 1
  %92 = vst [vmem:[#allocation1] ss:$4 sm:$0xff] %v20
  %v93 = vld.sshfl [vmem:[#allocation1] sm:$0xff pattern:$0x73625140]
  %v94 = vld.sshfl [vmem:[#allocation1 + $0x8] sm:$0xff pattern:$0x73625140]
  %97 = vmatpush.msra.mxu0 %v51
  %98 = vmatpush.msra.mxu0 %v49
  %99 = vmatpush.msra.mxu0 %v47
  %100 = vmatpush.msra.mxu0 %v45
  %101 = vmatpush.msra.mxu0 %v43
  %102 = vmatpush.msra.mxu0 %v41
  %103 = vmatpush.msra.mxu0 %v39
  %104 = vmatpush.msra.mxu0 %v37
  %105 = vmatpush.msra.mxu0 %v35
  %106 = vmatpush.msra.mxu0 %v33
  %107 = vmatpush.msra.mxu0 %v31
  %108 = vmatpush.msra.mxu0 %v29
  %109 = vmatpush.msra.mxu0 %v27
  %110 = vmatpush.msra.mxu0 %v25
  %111 = vmatpush.msra.mxu0 %v23
  %112 = vmatpush.msra.mxu0 %v21
  %113 = vmatmul.f32.gmra.mxu0 %v93
  %v114 = vpop.f32.mrf.mxu0
  %v115 = vadd.f32 %v87, %v114
  %116 = vdwg.mxu0
  %117 = vmatpush.msra.mxu0 %v83
  %118 = vmatpush.msra.mxu0 %v81
  %119 = vmatpush.msra.mxu0 %v79
  %120 = vmatpush.msra.mxu0 %v77
  %121 = vmatpush.msra.mxu0 %v75
  %122 = vmatpush.msra.mxu0 %v73
  %123 = vmatpush.msra.mxu0 %v71
  %124 = vmatpush.msra.mxu0 %v69
  %125 = vmatpush.msra.mxu0 %v67
  %126 = vmatpush.msra.mxu0 %v65
  %127 = vmatpush.msra.mxu0 %v63
  %128 = vmatpush.msra.mxu0 %v61
  %129 = vmatpush.msra.mxu0 %v59
  %130 = vmatpush.msra.mxu0 %v57
  %131 = vmatpush.msra.mxu0 %v55
  %132 = vmatpush.msra.mxu0 %v53
  %133 = vmatmul.f32.gmra.mxu0 %v94
  %v134 = vpop.f32.mrf.mxu0
  %v135 = vadd.f32 %v115, %v134
  %136 = vdwg.mxu0
  %137 = vmatpush.msra.mxu0 %v52
  %138 = vmatpush.msra.mxu0 %v50
  %139 = vmatpush.msra.mxu0 %v48
  %140 = vmatpush.msra.mxu0 %v46
  %141 = vmatpush.msra.mxu0 %v44
  %142 = vmatpush.msra.mxu0 %v42
  %143 = vmatpush.msra.mxu0 %v40
  %144 = vmatpush.msra.mxu0 %v38
  %145 = vmatpush.msra.mxu0 %v36
  %146 = vmatpush.msra.mxu0 %v34
  %147 = vmatpush.msra.mxu0 %v32
  %148 = vmatpush.msra.mxu0 %v30
  %149 = vmatpush.msra.mxu0 %v28
  %150 = vmatpush.msra.mxu0 %v26
  %151 = vmatpush.msra.mxu0 %v24
  %152 = vmatpush.msra.mxu0 %v22
  %153 = vmatmul.f32.gmra.mxu0 %v93
  %v154 = vpop.f32.mrf.mxu0
  %v155 = vadd.f32 %v88, %v154
  %156 = vdwg.mxu0
  %157 = vmatpush.msra.mxu0 %v84
  %158 = vmatpush.msra.mxu0 %v82
  %159 = vmatpush.msra.mxu0 %v80
  %160 = vmatpush.msra.mxu0 %v78
  %161 = vmatpush.msra.mxu0 %v76
  %162 = vmatpush.msra.mxu0 %v74
  %163 = vmatpush.msra.mxu0 %v72
  %164 = vmatpush.msra.mxu0 %v70
  %165 = vmatpush.msra.mxu0 %v68
  %166 = vmatpush.msra.mxu0 %v66
  %167 = vmatpush.msra.mxu0 %v64
  %168 = vmatpush.msra.mxu0 %v62
  %169 = vmatpush.msra.mxu0 %v60
  %170 = vmatpush.msra.mxu0 %v58
  %171 = vmatpush.msra.mxu0 %v56
  %172 = vmatpush.msra.mxu0 %v54
  %173 = vmatmul.f32.gmra.mxu0 %v94
  %v174 = vpop.f32.mrf.mxu0
  %v175 = vadd.f32 %v155, %v174
  %176 = vdwg.mxu0
  %v177 = vtanh.pop %v135
  %v178 = vtanh.pop %v175
  %v179 = vmul.f32 %v177, 1.442695
  %v180 = vpow.pop %v179
  %v181 = vmul.f32 %v178, 1.442695
  %v182 = vpow.pop %v181
  %v183 = vld [vmem:[%s3] sm:$0xff]
  %v184 = vld [vmem:[%s3 + $0x8] sm:$0xff]
  %v185 = vld [vmem:[%s3 + $0x10] sm:$0xff]
  %v186 = vld [vmem:[%s3 + $0x18] sm:$0xff]
  %v187 = vld [vmem:[%s3 + $0x20] sm:$0xff]
  %v188 = vld [vmem:[%s3 + $0x28] sm:$0xff]
  %v189 = vld [vmem:[%s3 + $0x30] sm:$0xff]
  %v190 = vld [vmem:[%s3 + $0x38] sm:$0xff]
  %v191 = vld [vmem:[%s3 + $0x40] sm:$0xff]
  %v192 = vld [vmem:[%s3 + $0x48] sm:$0xff]
  %v193 = vld [vmem:[%s3 + $0x50] sm:$0xff]
  %v194 = vld [vmem:[%s3 + $0x58] sm:$0xff]
  %v195 = vld [vmem:[%s3 + $0x60] sm:$0xff]
  %v196 = vld [vmem:[%s3 + $0x68] sm:$0xff]
  %v197 = vld [vmem:[%s3 + $0x70] sm:$0xff]
  %v198 = vld [vmem:[%s3 + $0x78] sm:$0xff]
  %v199 = vld [vmem:[%s3 + $0x80] sm:$0xff]
  %v200 = vld [vmem:[%s3 + $0x88] sm:$0xff]
  %v201 = vld [vmem:[%s3 + $0x90] sm:$0xff]
  %v202 = vld [vmem:[%s3 + $0x98] sm:$0xff]
  %v203 = vld [vmem:[%s3 + $0xa0] sm:$0xff]
  %v204 = vld [vmem:[%s3 + $0xa8] sm:$0xff]
  %v205 = vld [vmem:[%s3 + $0xb0] sm:$0xff]
  %v206 = vld [vmem:[%s3 + $0xb8] sm:$0xff]
  %v207 = vld [vmem:[%s3 + $0xc0] sm:$0xff]
  %v208 = vld [vmem:[%s3 + $0xc8] sm:$0xff]
  %v209 = vld [vmem:[%s3 + $0xd0] sm:$0xff]
  %v210 = vld [vmem:[%s3 + $0xd8] sm:$0xff]
  %v211 = vld [vmem:[%s3 + $0xe0] sm:$0xff]
  %v212 = vld [vmem:[%s3 + $0xe8] sm:$0xff]
  %v213 = vld [vmem:[%s3 + $0xf0] sm:$0xff]
  %v214 = vld [vmem:[%s3 + $0xf8] sm:$0xff]
  %v215 = vld [vmem:[%s3 + $0x100] sm:$0xff]
  %v216 = vld [vmem:[%s3 + $0x108] sm:$0xff]
  %v217 = vld [vmem:[%s3 + $0x110] sm:$0xff]
  %v218 = vld [vmem:[%s3 + $0x118] sm:$0xff]
  %v219 = vld [vmem:[%s3 + $0x120] sm:$0xff]
  %v220 = vld [vmem:[%s3 + $0x128] sm:$0xff]
  %v221 = vld [vmem:[%s3 + $0x130] sm:$0xff]
  %v222 = vld [vmem:[%s3 + $0x138] sm:$0xff]
  %v223 = vld [vmem:[%s3 + $0x140] sm:$0xff]
  %v224 = vld [vmem:[%s3 + $0x148] sm:$0xff]
  %v225 = vld [vmem:[%s3 + $0x150] sm:$0xff]
  %v226 = vld [vmem:[%s3 + $0x158] sm:$0xff]
  %v227 = vld [vmem:[%s3 + $0x160] sm:$0xff]
  %v228 = vld [vmem:[%s3 + $0x168] sm:$0xff]
  %v229 = vld [vmem:[%s3 + $0x170] sm:$0xff]
  %v230 = vld [vmem:[%s3 + $0x178] sm:$0xff]
  %v231 = vld [vmem:[%s3 + $0x180] sm:$0xff]
  %v232 = vld [vmem:[%s3 + $0x188] sm:$0xff]
  %v233 = vld [vmem:[%s3 + $0x190] sm:$0xff]
  %v234 = vld [vmem:[%s3 + $0x198] sm:$0xff]
  %v235 = vld [vmem:[%s3 + $0x1a0] sm:$0xff]
  %v236 = vld [vmem:[%s3 + $0x1a8] sm:$0xff]
  %v237 = vld [vmem:[%s3 + $0x1b0] sm:$0xff]
  %v238 = vld [vmem:[%s3 + $0x1b8] sm:$0xff]
  %v239 = vld [vmem:[%s3 + $0x1c0] sm:$0xff]
  %v240 = vld [vmem:[%s3 + $0x1c8] sm:$0xff]
  %v241 = vld [vmem:[%s3 + $0x1d0] sm:$0xff]
  %v242 = vld [vmem:[%s3 + $0x1d8] sm:$0xff]
  %v243 = vld [vmem:[%s3 + $0x1e0] sm:$0xff]
  %v244 = vld [vmem:[%s3 + $0x1e8] sm:$0xff]
  %v245 = vld [vmem:[%s3 + $0x1f0] sm:$0xff]
  %v246 = vld [vmem:[%s3 + $0x1f8] sm:$0xff]
  %247 = vmatpush.msra.mxu0 %v213
  %248 = vmatpush.msra.mxu0 %v211
  %249 = vmatpush.msra.mxu0 %v209
  %250 = vmatpush.msra.mxu0 %v207
  %251 = vmatpush.msra.mxu0 %v205
  %252 = vmatpush.msra.mxu0 %v203
  %253 = vmatpush.msra.mxu0 %v201
  %254 = vmatpush.msra.mxu0 %v199
  %255 = vmatpush.msra.mxu0 %v197
  %256 = vmatpush.msra.mxu0 %v195
  %257 = vmatpush.msra.mxu0 %v193
  %258 = vmatpush.msra.mxu0 %v191
  %259 = vmatpush.msra.mxu0 %v189
  %260 = vmatpush.msra.mxu0 %v187
  %261 = vmatpush.msra.mxu0 %v185
  %262 = vmatpush.msra.mxu0 %v183
  %263 = vmatmul.f32.gmra.mxu0 %v180
  %v264 = vpop.f32.mrf.mxu0
  %v265 = vadd.f32 0.0, %v264
  %266 = vdwg.mxu0
  %267 = vmatpush.msra.mxu0 %v245
  %268 = vmatpush.msra.mxu0 %v243
  %269 = vmatpush.msra.mxu0 %v241
  %270 = vmatpush.msra.mxu0 %v239
  %271 = vmatpush.msra.mxu0 %v237
  %272 = vmatpush.msra.mxu0 %v235
  %273 = vmatpush.msra.mxu0 %v233
  %274 = vmatpush.msra.mxu0 %v231
  %275 = vmatpush.msra.mxu0 %v229
  %276 = vmatpush.msra.mxu0 %v227
  %277 = vmatpush.msra.mxu0 %v225
  %278 = vmatpush.msra.mxu0 %v223
  %279 = vmatpush.msra.mxu0 %v221
  %280 = vmatpush.msra.mxu0 %v219
  %281 = vmatpush.msra.mxu0 %v217
  %282 = vmatpush.msra.mxu0 %v215
  %283 = vmatmul.f32.gmra.mxu0 %v182
  %v284 = vpop.f32.mrf.mxu0
  %v285 = vadd.f32 %v265, %v284
  %286 = vdwg.mxu0
  %287 = vmatpush.msra.mxu0 %v214
  %288 = vmatpush.msra.mxu0 %v212
  %289 = vmatpush.msra.mxu0 %v210
  %290 = vmatpush.msra.mxu0 %v208
  %291 = vmatpush.msra.mxu0 %v206
  %292 = vmatpush.msra.mxu0 %v204
  %293 = vmatpush.msra.mxu0 %v202
  %294 = vmatpush.msra.mxu0 %v200
  %295 = vmatpush.msra.mxu0 %v198
  %296 = vmatpush.msra.mxu0 %v196
  %297 = vmatpush.msra.mxu0 %v194
  %298 = vmatpush.msra.mxu0 %v192
  %299 = vmatpush.msra.mxu0 %v190
  %300 = vmatpush.msra.mxu0 %v188
  %301 = vmatpush.msra.mxu0 %v186
  %302 = vmatpush.msra.mxu0 %v184
  %303 = vmatmul.f32.gmra.mxu0 %v180
  %v304 = vpop.f32.mrf.mxu0
  %v305 = vadd.f32 0.0, %v304
  %306 = vdwg.mxu0
  %307 = vmatpush.msra.mxu0 %v246
  %308 = vmatpush.msra.mxu0 %v244
  %309 = vmatpush.msra.mxu0 %v242
  %310 = vmatpush.msra.mxu0 %v240
  %311 = vmatpush.msra.mxu0 %v238
  %312 = vmatpush.msra.mxu0 %v236
  %313 = vmatpush.msra.mxu0 %v234
  %314 = vmatpush.msra.mxu0 %v232
  %315 = vmatpush.msra.mxu0 %v230
  %316 = vmatpush.msra.mxu0 %v228
  %317 = vmatpush.msra.mxu0 %v226
  %318 = vmatpush.msra.mxu0 %v224
  %319 = vmatpush.msra.mxu0 %v222
  %320 = vmatpush.msra.mxu0 %v220
  %321 = vmatpush.msra.mxu0 %v218
  %322 = vmatpush.msra.mxu0 %v216
  %323 = vmatmul.f32.gmra.mxu0 %v182
  %v324 = vpop.f32.mrf.mxu0
  %v325 = vadd.f32 %v305, %v324
  %326 = vdwg.mxu0
  %v327 = vrcp.pop %v285
  %v328 = vmul.f32 %v285, %v327
  %v329 = vsub.f32 1.0, %v328
  %v330 = vmul.f32 %v327, %v329
  %v331 = vadd.f32 %v327, %v330
  %vm332 = vweird.f32 %v285
  %vm333 = vweird.f32 %v327
  %vm334 = vmor %vm332, %vm333
  %v335 = vsel %vm334, %v327, %v331
  %v336 = vand.u32 2147483647, %v285
  %vm337 = vcmp.eq.f32.partialorder %v336, 8.507059e+37
  %v338 = vand.u32 %v285, 2147483648
  %v339 = vor.u32 1.1754944e-38, %v338
  %v340 = vsel %vm337, %v339, %v335
  %v341 = vmul.f32 %v180, %v340
  %v342 = vrcp.pop %v325
  %v343 = vmul.f32 %v325, %v342
  %v344 = vsub.f32 1.0, %v343
  %v345 = vmul.f32 %v342, %v344
  %v346 = vadd.f32 %v342, %v345
  %vm347 = vweird.f32 %v325
  %vm348 = vweird.f32 %v342
  %vm349 = vmor %vm347, %vm348
  %v350 = vsel %vm349, %v342, %v346
  %v351 = vand.u32 2147483647, %v325
  %vm352 = vcmp.eq.f32.partialorder %v351, 8.507059e+37
  %v353 = vand.u32 %v325, 2147483648
  %v354 = vor.u32 1.1754944e-38, %v353
  %v355 = vsel %vm352, %v354, %v350
  %v356 = vmul.f32 %v182, %v355
  %v357 = vld [vmem:[%s4] sm:$0xf]
  %v360 = vrot.slane %v356, 6
  %vm361 = vcmask 1041408
  %v362 = vsel %vm361, %v341, %v360
  %v364 = vmul.f32 %v357, %v362
  %365 = vst [vmem:[%s5] sm:$0xf] %v364
  // Predicated region
  $region22: #{self_attention.1} parent=0 // pred_check
    _
  $region23: #{self_attention.1} parent=0 // pred_check_branch
    %367 = sbr.rel (0) target = $region25
  $region24: #{self_attention.1} parent=0 // pred_region
    _
  $region25: #{self_attention.1} parent=0 // pred_fallthru
    _
  // Predicated region
  $region26: #{self_attention.1} parent=0 // pred_check
    _
  $region27: #{self_attention.1} parent=0 // pred_check_branch
    %369 = sbr.rel (0) target = $region29
  $region28: #{self_attention.1} parent=0 // pred_region
    _
  $region29: #{self_attention.1} parent=0 // pred_fallthru
    _

</llo_original>
